<compile_context>
chip_gen: v6e
topology: v6e:2x2x1
jax: 0.10.0
libtpu: 0.0.40
codegen_flags: <defaults>
</compile_context>

<pallas_src>
import functools

import jax
import jax.numpy as jnp
import numpy as np
from jax.experimental import pallas as pl
from jax.experimental.pallas import tpu as pltpu


def _pick_time_tile(t, target=512):
    """Largest multiple-of-8 tile <= target that divides T, else the full T."""
    if t <= target:
        return t
    for cand in range(target - (target % 8), 7, -8):
        if t % cand == 0:
            return cand
    return t


def _spec_augment_kernel(params_ref, rep_ref, x_ref, o_ref, *,
                         time_stripes, freq_stripes):
    """params_ref: SMEM int32 (B, 2*(time_stripes+freq_stripes)), interleaved
                   [t_bgn, t_dist]*time_stripes ++ [f_bgn, f_dist]*freq_stripes.
       rep_ref:    SMEM float32 (B, C) per-(batch, channel) replacement value.
       x_ref/o_ref: VMEM (T_tile, F) tile for grid point (b, c, ti)."""
    b = pl.program_id(0)
    c = pl.program_id(1)
    ti = pl.program_id(2)

    t_tile, f_bins = x_ref.shape
    t0 = ti * t_tile
    f_off = 2 * time_stripes

    # Cheap scalar gate (SMEM-only reads): does this tile intersect any stripe?
    conds = []
    for s in range(time_stripes):
        bgn = params_ref[b, 2 * s]
        dist = params_ref[b, 2 * s + 1]
        conds.append((bgn < t0 + t_tile) & (bgn + dist > t0))
    for s in range(freq_stripes):
        conds.append(params_ref[b, f_off + 2 * s + 1] > 0)
    hit = functools.reduce(jnp.logical_or, conds)

    @pl.when(hit)
    def _():
        x = x_ref[...]
        rep = rep_ref[b, c].astype(o_ref.dtype)   # cast once, outside loops

        # 1-D masks along each drop dim only; OR over stripes; single select.
        t_idx = jax.lax.broadcasted_iota(jnp.int32, (t_tile, 1), 0) + t0
        f_idx = jax.lax.broadcasted_iota(jnp.int32, (1, f_bins), 1)

        t_mask = jnp.zeros((t_tile, 1), jnp.bool_)
        for s in range(time_stripes):
            bgn = params_ref[b, 2 * s]
            dist = params_ref[b, 2 * s + 1]
            t_mask = t_mask | ((t_idx >= bgn) & (t_idx < bgn + dist))

        f_mask = jnp.zeros((1, f_bins), jnp.bool_)
        for s in range(freq_stripes):
            bgn = params_ref[b, f_off + 2 * s]
            dist = params_ref[b, f_off + 2 * s + 1]
            f_mask = f_mask | ((f_idx >= bgn) & (f_idx < bgn + dist))

        o_ref[...] = jnp.where(t_mask | f_mask, rep, x)

    @pl.when(jnp.logical_not(hit))
    def _():
        o_ref[...] = x_ref[...]


def _sample_stripes(key, batch, total_width, drop_width, stripes_num):
    """Same distribution as the torch.randint pair in DropStripes.transform_slice."""
    if stripes_num <= 0 or drop_width <= 0:
        return jnp.zeros((batch, 2 * max(stripes_num, 0)), jnp.int32)
    k1, k2 = jax.random.split(key)
    dist = jax.random.randint(k1, (batch, stripes_num), 0, drop_width,
                              dtype=jnp.int32)
    high = jnp.maximum(total_width - dist, 1)   # guard drop_width >= total_width
    bgn = jax.random.randint(k2, (batch, stripes_num), 0, high, dtype=jnp.int32)
    return jnp.stack([bgn, dist], axis=-1).reshape(batch, 2 * stripes_num)


def sample_spec_augment_params(key, batch, time_steps, freq_bins, *,
                               time_drop_width, time_stripes_num,
                               freq_drop_width, freq_stripes_num):
    kt, kf = jax.random.split(key)
    pt = _sample_stripes(kt, batch, time_steps, time_drop_width, time_stripes_num)
    pf = _sample_stripes(kf, batch, freq_bins, freq_drop_width, freq_stripes_num)
    return jnp.concatenate([pt, pf], axis=1).astype(jnp.int32)


def spec_augmentation(x, key, *, time_drop_width, time_stripes_num,
                      freq_drop_width, freq_stripes_num,
                      replace="mean", training=True):
    """JAX/Pallas equivalent of SpecAugmentation.forward. Always returns an array."""
    assert x.ndim == 4
    if not training:
        return x
    if time_stripes_num <= 0 and freq_stripes_num <= 0:
        return x

    B, C, T, F = x.shape
    if replace == "zero":
        rep = jnp.zeros((B, C), jnp.float32)
    else:  # 'mean' == input.mean(-1).mean(-1): per-(batch, channel) scalar
        rep = jnp.mean(x, axis=(2, 3)).astype(jnp.float32)

    params = sample_spec_augment_params(
        key, B, T, F,
        time_drop_width=time_drop_width, time_stripes_num=time_stripes_num,
        freq_drop_width=freq_drop_width, freq_stripes_num=freq_stripes_num)

    t_tile = _pick_time_tile(T)
    n_t = T // t_tile

    kernel = functools.partial(_spec_augment_kernel,
                               time_stripes=time_stripes_num,
                               freq_stripes=freq_stripes_num)

    grid_spec = pltpu.PrefetchScalarGridSpec(
        num_scalar_prefetch=1,                       # stripe params -> SMEM
        grid=(B, C, n_t),
        in_specs=[
            # per-(batch, channel) replacement scalars, whole array in SMEM
            pl.BlockSpec(memory_space=pltpu.MemorySpace.SMEM),
            # one (t_tile, F) slab per (b, c, ti); last dims full-F / 8-aligned
            pl.BlockSpec((None, None, t_tile, F),
                         lambda b, c, t, params: (b, c, t, 0)),
        ],
        out_specs=pl.BlockSpec((None, None, t_tile, F),
                               lambda b, c, t, params: (b, c, t, 0)),
    )

    out = pl.pallas_call(
        kernel,
        out_shape=jax.ShapeDtypeStruct(x.shape, x.dtype),
        grid_spec=grid_spec,
        compiler_params=pltpu.CompilerParams(
            dimension_semantics=("parallel", "parallel", "parallel"),
            vmem_limit_bytes=32 * 1024 * 1024),
    )(params, rep, x)
    return out


def _reference(x, rep, params, time_stripes, freq_stripes):
    """Pure-numpy reference using the same stripe parameters / replacements."""
    x = x.copy()
    B = x.shape[0]
    off = 2 * time_stripes
    for n in range(B):
        for s in range(time_stripes):
            bgn, dist = int(params[n, 2 * s]), int(params[n, 2 * s + 1])
            x[n, :, bgn:bgn + dist, :] = rep[n][:, None, None]
        for s in range(freq_stripes):
            bgn, dist = int(params[n, off + 2 * s]), int(params[n, off + 2 * s + 1])
            x[n, :, :, bgn:bgn + dist] = rep[n][:, None, None]
    return x


if __name__ == "__main__":
    root = jax.random.PRNGKey(0)
    kx, kaug = jax.random.split(root)

    B, C, T, F = 2, 4, 16, 16
    cfg = dict(time_drop_width=4, time_stripes_num=2,
               freq_drop_width=4, freq_stripes_num=2)

    x = jax.random.normal(kx, (B, C, T, F), dtype=jnp.float32)

    # replace='mean' path
    out = spec_augmentation(x, kaug, replace="mean", training=True, **cfg)
    out = jax.block_until_ready(out)

    params = np.array(sample_spec_augment_params(kaug, B, T, F, **cfg))
    rep_mean = np.array(jnp.mean(x, axis=(2, 3)).astype(jnp.float32))
    ref = _reference(np.array(x), rep_mean, params,
                     cfg["time_stripes_num"], cfg["freq_stripes_num"])
    np.testing.assert_allclose(np.array(out), ref, rtol=0, atol=0)

    # replace='zero' path
    out0 = jax.block_until_ready(
        spec_augmentation(x, kaug, replace="zero", training=True, **cfg))
    ref0 = _reference(np.array(x), np.zeros((B, C), np.float32), params,
                      cfg["time_stripes_num"], cfg["freq_stripes_num"])
    np.testing.assert_allclose(np.array(out0), ref0, rtol=0, atol=0)

    # eval mode is the identity (and now returns a plain array, like training)
    out_eval = spec_augmentation(x, kaug, replace="mean", training=False, **cfg)
    np.testing.assert_allclose(np.array(out_eval), np.array(x), rtol=0, atol=0)

    print("KERNEL_OK")
</pallas_src>

<mosaic_0001>
module attributes {stable_mosaic.version = 11 : i64} {
  func.func @_spec_augment_kernel(%arg0: i32, %arg1: i32, %arg2: i32, %arg3: memref<2x8xi32, #tpu.memory_space<smem>>, %arg4: memref<2x4xf32, #tpu.memory_space<smem>>, %arg5: memref<1x1x16x16xf32, #tpu.memory_space<vmem>>, %arg6: memref<1x1x16x16xf32, #tpu.memory_space<vmem>>) attributes {dimension_semantics = [#tpu.dimension_semantics<parallel>, #tpu.dimension_semantics<parallel>, #tpu.dimension_semantics<parallel>], iteration_bounds = array<i64: 2, 4, 1>, scalar_prefetch = 1 : i64, scratch_operands = 0 : i64, tpu.core_type = #tpu.core_type<tc>, window_params = [{transform_indices = @transform_0, window_bounds = array<i64: 2, 4>}, {transform_indices = @transform_1, window_bounds = array<i64: 1, 1, 16, 16>}, {transform_indices = @transform_2, window_bounds = array<i64: 1, 1, 16, 16>}]} {
    %c16_i32 = arith.constant 16 : i32
    %0 = arith.muli %arg2, %c16_i32 : i32
    %1 = arith.index_cast %arg0 : i32 to index
    %c0 = arith.constant 0 : index
    %2 = memref.load %arg3[%1, %c0] : memref<2x8xi32, #tpu.memory_space<smem>>
    %3 = arith.index_cast %arg0 : i32 to index
    %c1 = arith.constant 1 : index
    %4 = memref.load %arg3[%3, %c1] : memref<2x8xi32, #tpu.memory_space<smem>>
    %c16_i32_0 = arith.constant 16 : i32
    %5 = arith.addi %0, %c16_i32_0 : i32
    %6 = arith.cmpi slt, %2, %5 : i32
    %7 = arith.addi %2, %4 : i32
    %8 = arith.cmpi sgt, %7, %0 : i32
    %9 = arith.andi %6, %8 : i1
    %10 = arith.index_cast %arg0 : i32 to index
    %c2 = arith.constant 2 : index
    %11 = memref.load %arg3[%10, %c2] : memref<2x8xi32, #tpu.memory_space<smem>>
    %12 = arith.index_cast %arg0 : i32 to index
    %c3 = arith.constant 3 : index
    %13 = memref.load %arg3[%12, %c3] : memref<2x8xi32, #tpu.memory_space<smem>>
    %c16_i32_1 = arith.constant 16 : i32
    %14 = arith.addi %0, %c16_i32_1 : i32
    %15 = arith.cmpi slt, %11, %14 : i32
    %16 = arith.addi %11, %13 : i32
    %17 = arith.cmpi sgt, %16, %0 : i32
    %18 = arith.andi %15, %17 : i1
    %19 = arith.index_cast %arg0 : i32 to index
    %c5 = arith.constant 5 : index
    %20 = memref.load %arg3[%19, %c5] : memref<2x8xi32, #tpu.memory_space<smem>>
    %c0_i32 = arith.constant 0 : i32
    %21 = arith.cmpi sgt, %20, %c0_i32 : i32
    %22 = arith.index_cast %arg0 : i32 to index
    %c7 = arith.constant 7 : index
    %23 = memref.load %arg3[%22, %c7] : memref<2x8xi32, #tpu.memory_space<smem>>
    %c0_i32_2 = arith.constant 0 : i32
    %24 = arith.cmpi sgt, %23, %c0_i32_2 : i32
    %25 = arith.ori %9, %18 : i1
    %26 = arith.ori %25, %21 : i1
    %27 = arith.ori %26, %24 : i1
    %28 = arith.extui %27 : i1 to i32
    %c0_i32_3 = arith.constant 0 : i32
    %29 = arith.cmpi ne, %28, %c0_i32_3 : i32
    scf.if %29 {
      %c0_5 = arith.constant 0 : index
      %c0_6 = arith.constant 0 : index
      %c0_7 = arith.constant 0 : index
      %c0_8 = arith.constant 0 : index
      %33 = vector.load %arg5[%c0_5, %c0_6, %c0_7, %c0_8] : memref<1x1x16x16xf32, #tpu.memory_space<vmem>>, vector<1x1x16x16xf32>
      %34 = vector.shape_cast %33 : vector<1x1x16x16xf32> to vector<16x16xf32>
      %35 = arith.index_cast %arg0 : i32 to index
      %36 = arith.index_cast %arg1 : i32 to index
      %37 = memref.load %arg4[%35, %36] : memref<2x4xf32, #tpu.memory_space<smem>>
      %38 = tpu.iota {dimensions = array<i32: 0>} : vector<16x1xi32>
      %39 = vector.broadcast %0 : i32 to vector<16x1xi32>
      %40 = arith.addi %38, %39 : vector<16x1xi32>
      %41 = tpu.iota {dimensions = array<i32: 1>} : vector<1x16xi32>
      %false = arith.constant false
      %42 = vector.broadcast %false : i1 to vector<16x1xi1>
      %43 = arith.index_cast %arg0 : i32 to index
      %c0_9 = arith.constant 0 : index
      %44 = memref.load %arg3[%43, %c0_9] : memref<2x8xi32, #tpu.memory_space<smem>>
      %45 = arith.index_cast %arg0 : i32 to index
      %c1_10 = arith.constant 1 : index
      %46 = memref.load %arg3[%45, %c1_10] : memref<2x8xi32, #tpu.memory_space<smem>>
      %47 = vector.broadcast %44 : i32 to vector<16x1xi32>
      %48 = arith.cmpi sge, %40, %47 : vector<16x1xi32>
      %49 = arith.addi %44, %46 : i32
      %50 = vector.broadcast %49 : i32 to vector<16x1xi32>
      %51 = arith.cmpi slt, %40, %50 : vector<16x1xi32>
      %52 = arith.andi %48, %51 : vector<16x1xi1>
      %53 = arith.ori %42, %52 : vector<16x1xi1>
      %54 = arith.index_cast %arg0 : i32 to index
      %c2_11 = arith.constant 2 : index
      %55 = memref.load %arg3[%54, %c2_11] : memref<2x8xi32, #tpu.memory_space<smem>>
      %56 = arith.index_cast %arg0 : i32 to index
      %c3_12 = arith.constant 3 : index
      %57 = memref.load %arg3[%56, %c3_12] : memref<2x8xi32, #tpu.memory_space<smem>>
      %58 = vector.broadcast %55 : i32 to vector<16x1xi32>
      %59 = arith.cmpi sge, %40, %58 : vector<16x1xi32>
      %60 = arith.addi %55, %57 : i32
      %61 = vector.broadcast %60 : i32 to vector<16x1xi32>
      %62 = arith.cmpi slt, %40, %61 : vector<16x1xi32>
      %63 = arith.andi %59, %62 : vector<16x1xi1>
      %64 = arith.ori %53, %63 : vector<16x1xi1>
      %false_13 = arith.constant false
      %65 = vector.broadcast %false_13 : i1 to vector<1x16xi1>
      %66 = arith.index_cast %arg0 : i32 to index
      %c4 = arith.constant 4 : index
      %67 = memref.load %arg3[%66, %c4] : memref<2x8xi32, #tpu.memory_space<smem>>
      %68 = arith.index_cast %arg0 : i32 to index
      %c5_14 = arith.constant 5 : index
      %69 = memref.load %arg3[%68, %c5_14] : memref<2x8xi32, #tpu.memory_space<smem>>
      %70 = vector.broadcast %67 : i32 to vector<1x16xi32>
      %71 = arith.cmpi sge, %41, %70 : vector<1x16xi32>
      %72 = arith.addi %67, %69 : i32
      %73 = vector.broadcast %72 : i32 to vector<1x16xi32>
      %74 = arith.cmpi slt, %41, %73 : vector<1x16xi32>
      %75 = arith.andi %71, %74 : vector<1x16xi1>
      %76 = arith.ori %65, %75 : vector<1x16xi1>
      %77 = arith.index_cast %arg0 : i32 to index
      %c6 = arith.constant 6 : index
      %78 = memref.load %arg3[%77, %c6] : memref<2x8xi32, #tpu.memory_space<smem>>
      %79 = arith.index_cast %arg0 : i32 to index
      %c7_15 = arith.constant 7 : index
      %80 = memref.load %arg3[%79, %c7_15] : memref<2x8xi32, #tpu.memory_space<smem>>
      %81 = vector.broadcast %78 : i32 to vector<1x16xi32>
      %82 = arith.cmpi sge, %41, %81 : vector<1x16xi32>
      %83 = arith.addi %78, %80 : i32
      %84 = vector.broadcast %83 : i32 to vector<1x16xi32>
      %85 = arith.cmpi slt, %41, %84 : vector<1x16xi32>
      %86 = arith.andi %82, %85 : vector<1x16xi1>
      %87 = arith.ori %76, %86 : vector<1x16xi1>
      %88 = vector.broadcast %64 : vector<16x1xi1> to vector<16x16xi1>
      %89 = vector.broadcast %87 : vector<1x16xi1> to vector<16x16xi1>
      %90 = arith.ori %88, %89 : vector<16x16xi1>
      %91 = vector.broadcast %37 : f32 to vector<16x16xf32>
      %92 = arith.select %90, %91, %34 : vector<16x16xi1>, vector<16x16xf32>
      %c0_16 = arith.constant 0 : index
      %c0_17 = arith.constant 0 : index
      %c0_18 = arith.constant 0 : index
      %c0_19 = arith.constant 0 : index
      %93 = vector.load %arg6[%c0_16, %c0_17, %c0_18, %c0_19] : memref<1x1x16x16xf32, #tpu.memory_space<vmem>>, vector<1x1x16x16xf32>
      %94 = vector.shape_cast %93 : vector<1x1x16x16xf32> to vector<16x16xf32>
      %95 = vector.shape_cast %92 : vector<16x16xf32> to vector<1x1x16x16xf32>
      tpu.vector_store %arg6[%c0_16, %c0_17, %c0_18, %c0_19], %95 {strides = array<i32>} : memref<1x1x16x16xf32, #tpu.memory_space<vmem>>, vector<1x1x16x16xf32>,
    } else {
    }
    %true = arith.constant true
    %30 = arith.xori %27, %true : i1
    %31 = arith.extui %30 : i1 to i32
    %c0_i32_4 = arith.constant 0 : i32
    %32 = arith.cmpi ne, %31, %c0_i32_4 : i32
    scf.if %32 {
      %c0_5 = arith.constant 0 : index
      %c0_6 = arith.constant 0 : index
      %c0_7 = arith.constant 0 : index
      %c0_8 = arith.constant 0 : index
      %33 = vector.load %arg5[%c0_5, %c0_6, %c0_7, %c0_8] : memref<1x1x16x16xf32, #tpu.memory_space<vmem>>, vector<1x1x16x16xf32>
      %34 = vector.shape_cast %33 : vector<1x1x16x16xf32> to vector<16x16xf32>
      %c0_9 = arith.constant 0 : index
      %c0_10 = arith.constant 0 : index
      %c0_11 = arith.constant 0 : index
      %c0_12 = arith.constant 0 : index
      %35 = vector.load %arg6[%c0_9, %c0_10, %c0_11, %c0_12] : memref<1x1x16x16xf32, #tpu.memory_space<vmem>>, vector<1x1x16x16xf32>
      %36 = vector.shape_cast %35 : vector<1x1x16x16xf32> to vector<16x16xf32>
      %37 = vector.shape_cast %34 : vector<16x16xf32> to vector<1x1x16x16xf32>
      tpu.vector_store %arg6[%c0_9, %c0_10, %c0_11, %c0_12], %37 {strides = array<i32>} : memref<1x1x16x16xf32, #tpu.memory_space<vmem>>, vector<1x1x16x16xf32>,
    } else {
    }
    return
  }
  func.func @transform_0(%arg0: i32, %arg1: i32, %arg2: i32, %arg3: memref<2x8xi32, #tpu.memory_space<smem>>) -> (i32, i32) {
    %c0_i32 = arith.constant 0 : i32
    %c0_i32_0 = arith.constant 0 : i32
    %c0_i32_1 = arith.constant 0 : i32
    return %c0_i32, %c0_i32_0 : i32, i32
  }
  func.func @transform_1(%arg0: i32, %arg1: i32, %arg2: i32, %arg3: memref<2x8xi32, #tpu.memory_space<smem>>) -> (i32, i32, i32, i32) {
    %c0_i32 = arith.constant 0 : i32
    %c0_i32_0 = arith.constant 0 : i32
    return %arg0, %arg1, %arg2, %c0_i32 : i32, i32, i32, i32
  }
  func.func @transform_2(%arg0: i32, %arg1: i32, %arg2: i32, %arg3: memref<2x8xi32, #tpu.memory_space<smem>>) -> (i32, i32, i32, i32) {
    %c0_i32 = arith.constant 0 : i32
    %c0_i32_0 = arith.constant 0 : i32
    return %arg0, %arg1, %arg2, %c0_i32 : i32, i32, i32, i32
  }
}

</mosaic_0001>

<llo_original>
// kernel: tpu_custom_call.1
$region0: #{tpu_custom_call.1}
  #allocation0 [shape = 'u32[]', space=smem, size = 0x4, offset = 0x4, fixed_abs, tag = 'smem constant byte address 0x4 - core index']
  #allocation1 [shape = 'u32[144,128]{1,0:T(1,128)}', space=vmem, size = 0x12000, scoped, tag = 'internal scratch']
  #allocation2 [shape = 's32[1]{0}', space=sflag, size = 0x4, scoped, tag = 'scoped memory for tpu_custom_call.1']
  #allocation3 [shape = 'u8[1024]{0}', space=smem, size = 0x400, scoped, tag = 'prefetched SMEM operand 0']
  %s0 = inlined_call_operand.hbm [shape: s32[2,8], index: 0, kind: input, shape index: {}]
  %s1 = inlined_call_operand.hbm [shape: f32[2,4], index: 1, kind: input, shape index: {}]
  %s2 = inlined_call_operand.hbm [shape: f32[2,4,16,16], index: 2, kind: input, shape index: {}]
  %s3 = inlined_call_operand.hbm [shape: f32[2,4,16,16], index: 3, kind: output, shape index: {}]
  %s4 = sld [smem:[#allocation0]]
  $region57: #{tpu_custom_call.1} parent=0
    _
  %s6 = ssub.s32 1, %s4
  %s7 = scalar_select 0, %s6, %s4
  %9 = dma.hbm_to_smem %s0, 32, [#allocation3], [#allocation2]
  %10 = dma.done [#allocation2], 32
  %11 = sfence
  $region1: #{tpu_custom_call.1} parent=0
    #allocation4 [shape = 'u8[1024]{0}', space=smem, size = 0x400, scoped, tag = 'input window, operand 1, single buffered']
    #allocation5 [shape = 's32[2]{0}', space=sflag, size = 0x8, scoped, tag = 'scoped memory for tpu_custom_call.1']
    #allocation6 [shape = 's32[2]{0}', space=sflag, size = 0x8, scoped, tag = 'scoped memory for tpu_custom_call.1']
    #allocation7 [shape = 's32[2]{0}', space=sflag, size = 0x8, scoped, tag = 'scoped memory for tpu_custom_call.1']
    #allocation8 [shape = 'u8[16384]{0}', space=vmem, size = 0x4000, scoped, tag = 'input window, operand 2']
    #allocation9 [shape = 'u8[16384]{0}', space=vmem, size = 0x4000, scoped, tag = 'output window, operand 0']
    %12 = vsyncpa [#allocation7], 0
    %13 = vsyncpa [#allocation5], 0
    %s14 = scalar_lea.sflag [#allocation5], 1
    %15 = vsyncpa %s14, 0
    %16 = vsyncpa [#allocation6], 0
    %s17 = scalar_lea.sflag [#allocation6], 1
    %18 = vsyncpa %s17, 0
    loop: start=0, step=1, limit=10
    $region2: #{tpu_custom_call.1} parent=1 // loop_pre_header
      _
    $region3: #{tpu_custom_call.1} parent=1 // loop_header
      %s20 = sphi 0, %s24
      %p21 = scmp.ge.s32.totalorder %s20, 10
      %s27 = sphi 0, %s46
      %s28 = sphi 0, %s42
      %s29 = sphi 0, %s38
      %s30 = sphi 0, %s27
      %s31 = sphi 0, %s28
      %s32 = sphi 0, %s29
      %s33 = sphi 0, %s30
      %s34 = sphi 0, %s31
      %s35 = sphi 0, %s32
      %s47 = sphi 0, %s47
      %s49 = sphi 0, %s47
      %s50 = sphi 0, %s49
      %s64 = sphi 0, %s50
      %s74 = sphi 0, %s76
      %s77 = sphi 0, %s74
      %s78 = sphi 0, %s77
      %s94 = sphi 0, %s78
      %s104 = sphi 0, %s106
      %s107 = sphi 0, %s104
      %s108 = sphi 0, %s107
      %s124 = sphi 0, %s108
    $region4: #{tpu_custom_call.1} parent=1 // loop_header_branch
      %23 = sbr.rel (%p21) target = $region8
    $region5: #{tpu_custom_call.1} parent=1 // loop_body
      %s25 = ssub.s32 %s20, 1
      %s26 = ssub.s32 %s20, 2
      %s36 = sadd.s32 1, %s29
      %p37 = scmp.ge.s32.totalorder %s36, 1
      %s38 = scalar_select %p37, 0, %s36
      %s39 = sadd.s32 1, %s28
      %s40 = scalar_select %p37, %s39, %s28
      %p41 = scmp.ge.s32.totalorder %s40, 4
      %s42 = scalar_select %p41, 0, %s40
      %s43 = sadd.s32 1, %s27
      %s44 = scalar_select %p41, %s43, %s27
      %p45 = scmp.ge.s32.totalorder %s44, 2
      %s46 = scalar_select %p45, 0, %s44
      %s48 = sadd.s32 %s47, 1
      %p51 = scmp.eq.s32.totalorder %s20, 7
      %p52 = scmp.ne.s32.totalorder %s47, %s49
      %p53 = scmp.eq.s32.totalorder %s20, 0
      %p54 = por %p52, %p53
      %p55 = scmp.ne.s32.totalorder %s47, %s49
      %p56 = scmp.eq.s32.totalorder %s25, 7
      %p57 = por %p55, %p56
      %p58 = scmp.ne.s32.totalorder %s49, %s50
      %p59 = scmp.eq.s32.totalorder %s25, 0
      %p60 = por %p58, %p59
      %p61 = scmp.ne.s32.totalorder %s49, %s50
      %p62 = scmp.eq.s32.totalorder %s26, 7
      %p63 = por %p61, %p62
      %p65 = scmp.ne.s32.totalorder %s50, %s64
      %p66 = scmp.eq.s32.totalorder %s26, 0
      %p67 = por %p65, %p66
      %s68 = ssub.s32 %s27, %s46
      %s69 = ssub.s32 %s28, %s42
      %s70 = sor.u32 %s68, %s69
      %s71 = ssub.s32 %s29, %s38
      %s72 = sor.u32 %s70, %s71
      %p73 = scmp.eq.s32.totalorder %s72, 0
      %s75 = sadd.s32 %s74, 1
      %s76 = scalar_select %p73, %s74, %s75
      %p79 = pneg %p73
      %p80 = scmp.eq.s32.totalorder %s20, 7
      %p81 = por %p79, %p80
      %p82 = scmp.ne.s32.totalorder %s74, %s77
      %p83 = scmp.eq.s32.totalorder %s20, 0
      %p84 = por %p82, %p83
      %p85 = scmp.ne.s32.totalorder %s74, %s77
      %p86 = scmp.eq.s32.totalorder %s25, 7
      %p87 = por %p85, %p86
      %p88 = scmp.ne.s32.totalorder %s77, %s78
      %p89 = scmp.eq.s32.totalorder %s25, 0
      %p90 = por %p88, %p89
      %p91 = scmp.ne.s32.totalorder %s77, %s78
      %p92 = scmp.eq.s32.totalorder %s26, 7
      %p93 = por %p91, %p92
      %p95 = scmp.ne.s32.totalorder %s78, %s94
      %p96 = scmp.eq.s32.totalorder %s26, 0
      %p97 = por %p95, %p96
      %s98 = ssub.s32 %s27, %s46
      %s99 = ssub.s32 %s28, %s42
      %s100 = sor.u32 %s98, %s99
      %s101 = ssub.s32 %s29, %s38
      %s102 = sor.u32 %s100, %s101
      %p103 = scmp.eq.s32.totalorder %s102, 0
      %s105 = sadd.s32 %s104, 1
      %s106 = scalar_select %p103, %s104, %s105
      %p109 = pneg %p103
      %p110 = scmp.eq.s32.totalorder %s20, 7
      %p111 = por %p109, %p110
      %p112 = scmp.ne.s32.totalorder %s104, %s107
      %p113 = scmp.eq.s32.totalorder %s20, 0
      %p114 = por %p112, %p113
      %p115 = scmp.ne.s32.totalorder %s104, %s107
      %p116 = scmp.eq.s32.totalorder %s25, 7
      %p117 = por %p115, %p116
      %p118 = scmp.ne.s32.totalorder %s107, %s108
      %p119 = scmp.eq.s32.totalorder %s25, 0
      %p120 = por %p118, %p119
      %p121 = scmp.ne.s32.totalorder %s107, %s108
      %p122 = scmp.eq.s32.totalorder %s26, 7
      %p123 = por %p121, %p122
      %p125 = scmp.ne.s32.totalorder %s108, %s124
      %p126 = scmp.eq.s32.totalorder %s26, 0
      %p127 = por %p125, %p126
      %p128 = scmp.le.s32.totalorder 1, %s20
      %p129 = scmp.lt.s32.totalorder %s20, 9
      %p130 = pnand %p128, %p129
      %p131 = pneg %p130
      // Predicated region
      $region9: #{tpu_custom_call.1} parent=5 // pred_check
        _
      $region10: #{tpu_custom_call.1} parent=5 // pred_check_branch
        %133 = sbr.rel (%p130) target = $region12
      $region11: #{tpu_custom_call.1} parent=5 // pred_region
        %s134 = ssub.s32 %s20, 1
        // Predicated region
        $region13: #{tpu_custom_call.1} parent=11 // pred_check
          %p135 = pneg %p60
        $region14: #{tpu_custom_call.1} parent=11 // pred_check_branch
          %137 = sbr.rel (%p135) target = $region16
        $region15: #{tpu_custom_call.1} parent=11 // pred_region
          %s139 = ssub.s32 32, 32
          %140 = vsyncadd [#allocation7], %s139
          %143 = dma.hbm_to_smem %s1, 32, [#allocation4], [#allocation7]
        $region16: #{tpu_custom_call.1} parent=11 // pred_fallthru
          _
      $region12: #{tpu_custom_call.1} parent=5 // pred_fallthru
        _
      %p144 = scmp.lt.s32.totalorder %s20, 8
      // Predicated region
      $region17: #{tpu_custom_call.1} parent=5 // pred_check
        %p145 = pneg %p144
      $region18: #{tpu_custom_call.1} parent=5 // pred_check_branch
        %147 = sbr.rel (%p145) target = $region20
      $region19: #{tpu_custom_call.1} parent=5 // pred_region
        // Predicated region
        $region21: #{tpu_custom_call.1} parent=19 // pred_check
          %p148 = pneg %p84
        $region22: #{tpu_custom_call.1} parent=19 // pred_check_branch
          %150 = sbr.rel (%p148) target = $region24
        $region23: #{tpu_custom_call.1} parent=19 // pred_region
          %s151 = sand.u32 %s74, 1
          %s152 = scalar_lea.sflag [#allocation5], %s151
          %s153 = sand.u32 %s74, 1
          %s154 = smul.addr %s153, 16
          %s155 = scalar_lea.vmem [#allocation8], %s154
          %s156 = smul.u32 2, %s29
          %s158 = ssub.s32 256, 256
          %159 = vsyncadd %s152, %s158
          %s160 = smul.addr %s28, 2
          %s161 = sadd.s32 %s156, %s160
          %s162 = smul.addr %s27, 8
          %s163 = sadd.s32 %s161, %s162
          %s164 = smul.addr %s163, 128
          %s165 = scalar_lea.hbm %s2, %s164
          %s166 = sshll.u32 %s155, 4
          %s167 = int_to_ptr.vmem [resolvable:$true] %s166
          %172 = dma.hbm_to_vmem [thread:$0]  %s165, 256, %s167, %s152, 128, 128, 8
        $region24: #{tpu_custom_call.1} parent=19 // pred_fallthru
          _
      $region20: #{tpu_custom_call.1} parent=5 // pred_fallthru
        _
      %p173 = scmp.le.s32.totalorder 1, %s20
      %p174 = scmp.lt.s32.totalorder %s20, 9
      %p175 = pnand %p173, %p174
      %p176 = pneg %p175
      // Predicated region
      $region25: #{tpu_custom_call.1} parent=5 // pred_check
        _
      $region26: #{tpu_custom_call.1} parent=5 // pred_check_branch
        %178 = sbr.rel (%p175) target = $region28
      $region27: #{tpu_custom_call.1} parent=5 // pred_region
        %s179 = ssub.s32 %s20, 1
        // Predicated region
        $region29: #{tpu_custom_call.1} parent=27 // pred_check
          %p180 = pneg %p60
        $region30: #{tpu_custom_call.1} parent=27 // pred_check_branch
          %182 = sbr.rel (%p180) target = $region32
        $region31: #{tpu_custom_call.1} parent=27 // pred_region
          %183 = dma.done [#allocation7], 32
        $region32: #{tpu_custom_call.1} parent=27 // pred_fallthru
          _
        %s184 = sand.u32 %s77, 1
        %s185 = scalar_lea.sflag [#allocation5], %s184
        %s186 = sand.u32 %s77, 1
        %s187 = smul.addr %s186, 16
        %s188 = scalar_lea.vmem [#allocation8], %s187
        // Predicated region
        $region33: #{tpu_custom_call.1} parent=27 // pred_check
          %p189 = pneg %p90
        $region34: #{tpu_custom_call.1} parent=27 // pred_check_branch
          %191 = sbr.rel (%p189) target = $region36
        $region35: #{tpu_custom_call.1} parent=27 // pred_region
          %192 = dma.done %s185, 256
        $region36: #{tpu_custom_call.1} parent=27 // pred_fallthru
          _
        %193 = sfence
        %p194 = pneg %p60
        %p195 = pneg %p57
        %s196 = sand.u32 %s77, 1
        %s197 = scalar_lea.sflag [#allocation5], %s196
        %s198 = sand.u32 %s77, 1
        %s199 = smul.addr %s198, 16
        %s200 = scalar_lea.vmem [#allocation8], %s199
        %p201 = pneg %p90
        %p202 = pneg %p87
        %p203 = pneg %p120
        %p204 = pneg %p117
        %s205 = sand.u32 %s107, 1
        %s206 = scalar_lea.sflag [#allocation6], %s205
        %s207 = sand.u32 %s107, 1
        %s208 = smul.addr %s207, 16
        %s209 = scalar_lea.vmem [#allocation9], %s208
        %s210 = smul.u32 2, %s32
        %s211 = smul.u32 2, %s32
        %s212 = smul.u32 %s32, 16
        %s213 = smul.u32 %s30, 128
        %s214 = sld [smem:[#allocation3 + %s213]]
        %s215 = sadd.s32 %s213, 1
        %s216 = sld [smem:[#allocation3 + %s215]]
        %s217 = sadd.s32 %s212, 16
        %p218 = scmp.lt.s32.totalorder %s214, %s217
        %s219 = sadd.s32 %s214, %s216
        %p220 = scmp.gt.s32.totalorder %s219, %s212
        %p221 = pnand %p218, %p220
        %p222 = pneg %p221
        %s223 = sadd.s32 %s213, 2
        %s224 = sld [smem:[#allocation3 + %s223]]
        %s225 = sadd.s32 %s213, 3
        %s226 = sld [smem:[#allocation3 + %s225]]
        %p227 = scmp.lt.s32.totalorder %s224, %s217
        %s228 = sadd.s32 %s224, %s226
        %p229 = scmp.gt.s32.totalorder %s228, %s212
        %p230 = pnand %p227, %p229
        %p231 = pneg %p230
        %s232 = sadd.s32 %s213, 5
        %s233 = sld [smem:[#allocation3 + %s232]]
        %p234 = scmp.gt.s32.totalorder %s233, 0
        %s235 = sadd.s32 %s213, 7
        %s236 = sld [smem:[#allocation3 + %s235]]
        %p237 = scmp.gt.s32.totalorder %s236, 0
        %p238 = por %p222, %p231
        %p239 = por %p238, %p234
        %p240 = por %p239, %p237
        // Predicated region
        $region37: #{tpu_custom_call.1} parent=27 // pred_check
          %p241 = pneg %p240
        $region38: #{tpu_custom_call.1} parent=27 // pred_check_branch
          %243 = sbr.rel (%p241) target = $region40
        $region39: #{tpu_custom_call.1} parent=27 // pred_region
          %v244 = vld [vmem:[%s188] sm:$0xff]
          %v245 = vld [vmem:[%s188 + $0x8] sm:$0xff]
          %s246 = sshra.s32 %s31, 7
          %s247 = sand.u32 %s31, 127
          %s248 = sadd.s32 %s246, %s30
          %s249 = smul.u32 %s248, 128
          %s250 = sshra.s32 %s31, 7
          %s251 = sand.u32 %s31, 127
          %s252 = sadd.s32 %s249, %s251
          %s253 = sld [smem:[#allocation4 + %s252]]
          %v254 = vlaneseq
          %v255 = vshrl.u32 %v254, 7
          %v256 = vadd.s32 %v255, 8
          %v257 = vstv %s212
          %v258 = vadd.s32 %v255, %v257
          %v259 = vadd.s32 %v256, %v257
          %v260 = vlaneseq
          %v261 = vand.u32 %v260, 127
          %s262 = sld [smem:[#allocation3 + %s213]]
          %s263 = sld [smem:[#allocation3 + %s215]]
          %v264 = vstv %s262
          %vm265 = vcmp.ge.s32.totalorder %v258, %v264
          %vm266 = vcmp.ge.s32.totalorder %v259, %v264
          %s267 = sadd.s32 %s262, %s263
          %v268 = vstv %s267
          %vm269 = vcmp.lt.s32.totalorder %v258, %v268
          %vm270 = vcmp.lt.s32.totalorder %v259, %v268
          %vm271 = vmand %vm265, %vm269
          %vm272 = vmand %vm266, %vm270
          %s273 = sld [smem:[#allocation3 + %s223]]
          %s274 = sld [smem:[#allocation3 + %s225]]
          %v275 = vstv %s273
          %vm276 = vcmp.ge.s32.totalorder %v258, %v275
          %vm277 = vcmp.ge.s32.totalorder %v259, %v275
          %s278 = sadd.s32 %s273, %s274
          %v279 = vstv %s278
          %vm280 = vcmp.lt.s32.totalorder %v258, %v279
          %vm281 = vcmp.lt.s32.totalorder %v259, %v279
          %vm282 = vmand %vm276, %vm280
          %vm283 = vmand %vm277, %vm281
          %vm284 = vmor %vm271, %vm282
          %vm285 = vmor %vm272, %vm283
          %s286 = sadd.s32 %s213, 4
          %s287 = sld [smem:[#allocation3 + %s286]]
          %s288 = sld [smem:[#allocation3 + %s232]]
          %v289 = vstv %s287
          %vm290 = vcmp.ge.s32.totalorder %v261, %v289
          %s291 = sadd.s32 %s287, %s288
          %v292 = vstv %s291
          %vm293 = vcmp.lt.s32.totalorder %v261, %v292
          %vm294 = vmand %vm290, %vm293
          %s295 = sadd.s32 %s213, 6
          %s296 = sld [smem:[#allocation3 + %s295]]
          %s297 = sld [smem:[#allocation3 + %s235]]
          %v298 = vstv %s296
          %vm299 = vcmp.ge.s32.totalorder %v261, %v298
          %s300 = sadd.s32 %s296, %s297
          %v301 = vstv %s300
          %vm302 = vcmp.lt.s32.totalorder %v261, %v301
          %vm303 = vmand %vm299, %vm302
          %vm304 = vmor %vm294, %vm303
          %v305 = vsel %vm284, 1, 0
          %v306 = vsel %vm285, 1, 0
          %vm307 = vcmp.eq.s32.totalorder %v305, 1
          %vm308 = vcmp.eq.s32.totalorder %v306, 1
          %v309 = vsel %vm304, 1, 0
          %vm310 = vcmp.eq.s32.totalorder %v309, 1
          %vm311 = vmor %vm307, %vm310
          %vm312 = vmor %vm308, %vm310
          %v313 = vstv %s253
          %v314 = vsel %vm311, %v313, %v244
          %v315 = vsel %vm312, %v313, %v245
          %vm316 = vcmask 130048
          %317 = vst.msk [vmem:[%s209] sm:$0xff] %vm316, %v314
          %318 = vst.msk [vmem:[%s209 + $0x8] sm:$0xff] %vm316, %v315
        $region40: #{tpu_custom_call.1} parent=27 // pred_fallthru
          _
        %p319 = pneg %p240
        // Predicated region
        $region41: #{tpu_custom_call.1} parent=27 // pred_check
          _
        $region42: #{tpu_custom_call.1} parent=27 // pred_check_branch
          %321 = sbr.rel (%p240) target = $region44
        $region43: #{tpu_custom_call.1} parent=27 // pred_region
          %v322 = vld [vmem:[%s188] sm:$0xff]
          %v323 = vld [vmem:[%s188 + $0x8] sm:$0xff]
          %vm324 = vcmask 130048
          %325 = vst.msk [vmem:[%s209] sm:$0xff] %vm324, %v322
          %326 = vst.msk [vmem:[%s209 + $0x8] sm:$0xff] %vm324, %v323
        $region44: #{tpu_custom_call.1} parent=27 // pred_fallthru
          _
        %s327 = sand.u32 %s107, 1
        %s328 = scalar_lea.sflag [#allocation6], %s327
        %s329 = sand.u32 %s107, 1
        %s330 = smul.addr %s329, 16
        %s331 = scalar_lea.vmem [#allocation9], %s330
        // Predicated region
        $region45: #{tpu_custom_call.1} parent=27 // pred_check
          %p332 = pneg %p117
        $region46: #{tpu_custom_call.1} parent=27 // pred_check_branch
          %334 = sbr.rel (%p332) target = $region48
        $region47: #{tpu_custom_call.1} parent=27 // pred_region
          %s335 = smul.u32 2, %s32
          %s337 = ssub.s32 256, 256
          %338 = vsyncadd %s328, %s337
          %s339 = smul.addr %s31, 2
          %s340 = sadd.s32 %s335, %s339
          %s341 = smul.addr %s30, 8
          %s342 = sadd.s32 %s340, %s341
          %s343 = smul.addr %s342, 128
          %s344 = scalar_lea.hbm %s3, %s343
          %s345 = sshll.u32 %s331, 4
          %s346 = int_to_ptr.vmem [resolvable:$true] %s345
          %351 = dma.vmem_to_hbm [thread:$0]  %s346, 256, %s344, %s328, 128, 128, 8
        $region48: #{tpu_custom_call.1} parent=27 // pred_fallthru
          _
      $region28: #{tpu_custom_call.1} parent=5 // pred_fallthru
        _
      %p352 = scmp.le.s32.totalorder 2, %s20
      // Predicated region
      $region49: #{tpu_custom_call.1} parent=5 // pred_check
        %p353 = pneg %p352
      $region50: #{tpu_custom_call.1} parent=5 // pred_check_branch
        %355 = sbr.rel (%p353) target = $region52
      $region51: #{tpu_custom_call.1} parent=5 // pred_region
        %s356 = ssub.s32 %s20, 2
        // Predicated region
        $region53: #{tpu_custom_call.1} parent=51 // pred_check
          %p357 = pneg %p123
        $region54: #{tpu_custom_call.1} parent=51 // pred_check_branch
          %359 = sbr.rel (%p357) target = $region56
        $region55: #{tpu_custom_call.1} parent=51 // pred_region
          %s360 = sand.u32 %s108, 1
          %s361 = scalar_lea.sflag [#allocation6], %s360
          %s362 = sand.u32 %s108, 1
          %s363 = smul.addr %s362, 16
          %s364 = scalar_lea.vmem [#allocation9], %s363
          %365 = dma.done %s361, 256
        $region56: #{tpu_custom_call.1} parent=51 // pred_fallthru
          _
      $region52: #{tpu_custom_call.1} parent=5 // pred_fallthru
        _
    $region6: #{tpu_custom_call.1} parent=1 // loop_footer
      %s24 = sadd.s32 1, %s20
    $region7: #{tpu_custom_call.1} parent=1 // loop_footer_branch
      %19 = sbr.rel target = $region3
    $region8: #{tpu_custom_call.1} parent=1 // loop_exit
      _
    %366 = vsyncpa [#allocation5], 1
    %s367 = scalar_lea.sflag [#allocation5], 1
    %368 = vsyncpa %s367, 1
    %369 = vsyncpa [#allocation6], 1
    %s370 = scalar_lea.sflag [#allocation6], 1
    %371 = vsyncpa %s370, 1
    %372 = vsyncpa [#allocation7], 1
    %s373 = scalar_lea.sflag [#allocation7], 1
    %374 = vsyncpa %s373, 1

</llo_original>
